<compile_context>
chip_gen: v7x
topology: tpu7x:2x2x1
jax: 0.10.0
libtpu: 0.0.40
codegen_flags: <defaults>
</compile_context>

<pallas_src>
import jax
import jax.numpy as jnp
from jax.experimental import pallas as pl
from jax.experimental.pallas import tpu as pltpu


def upsample_kernel(x_ref, wbd_ref, b_ref, ah_ref, kw_ref, o_ref):
    # x_ref : (1, H, W*Cin)        bf16 input tile (one batch element)
    # wbd_ref: (W*Cin, W*Cout)     bf16 block-diag kron(I_W, W_folded)
    # b_ref : (1, W*Cout)          fp32 BN-folded bias tiled along W
    # ah_ref: (H2, H)              bf16 bilinear interp matrix, H axis
    # kw_ref: (W*Cout, W2*Cout)    bf16 kron(A_w, I_Cout)^T (W-axis interp)
    # o_ref : (1, H2, W2*Cout)     fp32 lane-dense output tile
    x = x_ref[0]                                                       # (H, W*Cin)

    # 1x1 conv + folded BN: lane-dense matmul, K = W*Cin, N = W*Cout.
    y = jnp.dot(x, wbd_ref[...], preferred_element_type=jnp.float32)   # (H, W*Cout)
    y = jnp.maximum(y + b_ref[...], 0.0)                               # fp32 epilogue

    # Bilinear upsample (align_corners=True), separable:
    #   H axis:  A_h @ Y
    t = jnp.dot(ah_ref[...], y.astype(jnp.bfloat16),
                preferred_element_type=jnp.float32)                    # (H2, W*Cout)
    #   W axis (transpose-free Kronecker form):  T @ kron(A_w, I_Cout)^T
    out = jnp.dot(t.astype(jnp.bfloat16), kw_ref[...],
                  preferred_element_type=jnp.float32)                  # (H2, W2*Cout)

    o_ref[0] = out.astype(o_ref.dtype)


def bilinear_matrix(n_in, n_out, dtype=jnp.float32):
    """Interpolation matrix A (n_out, n_in) for align_corners=True bilinear."""
    if n_out == 1:
        A = jnp.zeros((1, n_in), dtype)
        return A.at[0, 0].set(1.0)
    src = jnp.arange(n_out, dtype=jnp.float32) * (n_in - 1) / (n_out - 1)
    i0 = jnp.clip(jnp.floor(src).astype(jnp.int32), 0, n_in - 1)
    i1 = jnp.clip(i0 + 1, 0, n_in - 1)
    w1 = src - i0.astype(jnp.float32)
    A = jnp.zeros((n_out, n_in), jnp.float32)
    rows = jnp.arange(n_out)
    A = A.at[rows, i0].add(1.0 - w1)
    A = A.at[rows, i1].add(w1)
    return A.astype(dtype)


def upsample_forward(x_nhwc, w_folded, b_folded, a_h, a_w):
    N, H, W, Cin = x_nhwc.shape
    Cout = w_folded.shape[1]
    H2, W2 = a_h.shape[0], a_w.shape[0]

    # Host-side layout prep (contiguous reshapes / small Kronecker expansions).
    x_in = x_nhwc.reshape(N, H, W * Cin).astype(jnp.bfloat16)
    # Block-diag conv weight: y[h, w*Cout+c] = sum_ci x[h, w*Cin+ci] * Wf[ci, c]
    w_bd = jnp.kron(jnp.eye(W, dtype=jnp.float32), w_folded).astype(jnp.bfloat16)
    b_tiled = jnp.tile(b_folded.reshape(1, Cout), (1, W)).astype(jnp.float32)
    a_h_b = a_h.astype(jnp.bfloat16)
    # W-interp Kronecker matrix: out[p, q*Cout+c] = sum_j A_w[q, j] * t[p, j*Cout+c]
    k_w = jnp.kron(a_w, jnp.eye(Cout, dtype=jnp.float32)).T.astype(jnp.bfloat16)

    flops = N * (2 * H * (W * Cin) * (W * Cout)
                 + 2 * H2 * H * (W * Cout)
                 + 2 * H2 * (W * Cout) * (W2 * Cout))
    bytes_accessed = (x_in.size * 2 + w_bd.size * 2 + b_tiled.size * 4
                      + a_h_b.size * 2 + k_w.size * 2
                      + N * H2 * W2 * Cout * 4)

    out = pl.pallas_call(
        upsample_kernel,
        out_shape=jax.ShapeDtypeStruct((N, H2, W2 * Cout), jnp.float32),
        grid_spec=pltpu.PrefetchScalarGridSpec(
            num_scalar_prefetch=0,
            grid=(N,),
            in_specs=[
                pl.BlockSpec((1, H, W * Cin), lambda n: (n, 0, 0)),
                pl.BlockSpec((W * Cin, W * Cout), lambda n: (0, 0)),
                pl.BlockSpec((1, W * Cout), lambda n: (0, 0)),
                pl.BlockSpec((H2, H), lambda n: (0, 0)),
                pl.BlockSpec((W * Cout, W2 * Cout), lambda n: (0, 0)),
            ],
            out_specs=pl.BlockSpec((1, H2, W2 * Cout), lambda n: (n, 0, 0)),
        ),
        compiler_params=pltpu.CompilerParams(
            dimension_semantics=("parallel",)),
        cost_estimate=pl.CostEstimate(
            flops=flops, transcendentals=0, bytes_accessed=bytes_accessed),
    )(x_in, w_bd, b_tiled, a_h_b, k_w)

    # Back to NHWC (contiguous reshape).
    return out.reshape(N, H2, W2, Cout)


if __name__ == "__main__":
    # Small shapes consistent with the module: NCHW (2, 4, 16, 16), Cout=8, scale=2
    N, Cin, H, W = 2, 4, 16, 16
    Cout = 8
    scale = 2
    H2, W2 = H * scale, W * scale

    key = jax.random.PRNGKey(0)
    k_x, k_w, k_g, k_b, k_m, k_v = jax.random.split(key, 6)

    # Input (conceptually NCHW like PyTorch), converted to NHWC for the kernel.
    x_nchw = jax.random.normal(k_x, (N, Cin, H, W), jnp.float32)
    x_nhwc = jnp.transpose(x_nchw, (0, 2, 3, 1))

    # BaseConv params (1x1 conv, bias=False) + BatchNorm2d (eval, running stats)
    conv_w = jax.random.normal(k_w, (Cout, Cin), jnp.float32) * 0.1   # (Cout,Cin,1,1) squeezed
    bn_gamma = 0.5 + jax.random.uniform(k_g, (Cout,), jnp.float32)
    bn_beta = jax.random.normal(k_b, (Cout,), jnp.float32) * 0.1
    bn_mean = jax.random.normal(k_m, (Cout,), jnp.float32) * 0.1
    bn_var = 0.5 + jax.random.uniform(k_v, (Cout,), jnp.float32)
    bn_eps = 1e-3

    # Fold BN into the 1x1 conv: y = x @ Wf + bf
    scale_bn = bn_gamma / jnp.sqrt(bn_var + bn_eps)                   # (Cout,)
    w_folded = (conv_w * scale_bn[:, None]).T                         # (Cin, Cout)
    b_folded = (bn_beta - bn_mean * scale_bn).reshape(1, Cout)        # (1, Cout)

    # Bilinear (align_corners=True) interpolation matrices
    a_h = bilinear_matrix(H, H2)
    a_w = bilinear_matrix(W, W2)

    out = upsample_forward(x_nhwc, w_folded, b_folded, a_h, a_w)
    out = jax.block_until_ready(out)
    assert out.shape == (N, H2, W2, Cout)

    # Plain-JAX fp32 reference (semantic check; loose tol because the kernel
    # uses bf16 MXU operands with fp32 accumulation).
    y_ref = jnp.maximum(
        jnp.einsum('nhwc,co->nhwo', x_nhwc, w_folded)
        + b_folded.reshape(1, 1, 1, Cout), 0.0)
    ref = jnp.einsum('pi,niwc->npwc', a_h, y_ref)
    ref = jnp.einsum('qj,npjc->npqc', a_w, ref)
    assert jnp.max(jnp.abs(out - ref)) < 5e-2, "mismatch vs fp32 reference"

    # bf16-operand-matched reference (tight check of kernel plumbing/layout).
    xb = x_nhwc.astype(jnp.bfloat16).astype(jnp.float32)
    wb = w_folded.astype(jnp.bfloat16).astype(jnp.float32)
    ahb = a_h.astype(jnp.bfloat16).astype(jnp.float32)
    awb = a_w.astype(jnp.bfloat16).astype(jnp.float32)
    y2 = jnp.maximum(
        jnp.einsum('nhwc,co->nhwo', xb, wb) + b_folded.reshape(1, 1, 1, Cout), 0.0)
    y2 = y2.astype(jnp.bfloat16).astype(jnp.float32)
    r2 = jnp.einsum('pi,niwc->npwc', ahb, y2)
    r2 = r2.astype(jnp.bfloat16).astype(jnp.float32)
    r2 = jnp.einsum('qj,npjc->npqc', awb, r2)
    assert jnp.max(jnp.abs(out - r2)) < 1e-2, "mismatch vs bf16-matched reference"

    print("KERNEL_OK")
</pallas_src>

<mosaic_0001>
module attributes {stable_mosaic.version = 11 : i64} {
  func.func @upsample_kernel(%arg0: i32, %arg1: memref<1x16x64xbf16, #tpu.memory_space<vmem>>, %arg2: memref<64x128xbf16, #tpu.memory_space<vmem>>, %arg3: memref<1x128xf32, #tpu.memory_space<vmem>>, %arg4: memref<32x16xbf16, #tpu.memory_space<vmem>>, %arg5: memref<128x256xbf16, #tpu.memory_space<vmem>>, %arg6: memref<1x32x256xf32, #tpu.memory_space<vmem>>) attributes {dimension_semantics = [#tpu.dimension_semantics<parallel>], iteration_bounds = array<i64: 2>, scalar_prefetch = 0 : i64, scratch_operands = 0 : i64, tpu.core_type = #tpu.core_type<tc>, window_params = [{transform_indices = @transform_0, window_bounds = array<i64: 1, 16, 64>}, {pipeline_mode = #tpu.pipeline_mode<synchronous>, transform_indices = @transform_1, window_bounds = array<i64: 64, 128>}, {pipeline_mode = #tpu.pipeline_mode<synchronous>, transform_indices = @transform_2, window_bounds = array<i64: 1, 128>}, {pipeline_mode = #tpu.pipeline_mode<synchronous>, transform_indices = @transform_3, window_bounds = array<i64: 32, 16>}, {pipeline_mode = #tpu.pipeline_mode<synchronous>, transform_indices = @transform_4, window_bounds = array<i64: 128, 256>}, {transform_indices = @transform_5, window_bounds = array<i64: 1, 32, 256>}]} {
    %c0 = arith.constant 0 : index
    %c0_0 = arith.constant 0 : index
    %c0_1 = arith.constant 0 : index
    %0 = vector.load %arg1[%c0, %c0_0, %c0_1] : memref<1x16x64xbf16, #tpu.memory_space<vmem>>, vector<1x16x64xbf16>
    %1 = vector.shape_cast %0 : vector<1x16x64xbf16> to vector<16x64xbf16>
    %c0_2 = arith.constant 0 : index
    %c0_3 = arith.constant 0 : index
    %2 = vector.load %arg2[%c0_2, %c0_3] : memref<64x128xbf16, #tpu.memory_space<vmem>>, vector<64x128xbf16>
    %cst = arith.constant dense<0.000000e+00> : vector<16x128xf32>
    %3 = tpu.matmul %1, %2, %cst {dimension_numbers = #tpu.dot_dimension_numbers<[1], [0], [0], [1], [0, 0, 1, 1], [], []>} : vector<16x64xbf16>, vector<64x128xbf16>, vector<16x128xf32> -> vector<16x128xf32>
    %c0_4 = arith.constant 0 : index
    %c0_5 = arith.constant 0 : index
    %4 = vector.load %arg3[%c0_4, %c0_5] : memref<1x128xf32, #tpu.memory_space<vmem>>, vector<1x128xf32>
    %5 = vector.broadcast %4 : vector<1x128xf32> to vector<16x128xf32>
    %6 = arith.addf %3, %5 : vector<16x128xf32>
    %cst_6 = arith.constant 0.000000e+00 : f32
    %7 = vector.broadcast %cst_6 : f32 to vector<16x128xf32>
    %8 = arith.maximumf %6, %7 : vector<16x128xf32>
    %c0_7 = arith.constant 0 : index
    %c0_8 = arith.constant 0 : index
    %9 = vector.load %arg4[%c0_7, %c0_8] : memref<32x16xbf16, #tpu.memory_space<vmem>>, vector<32x16xbf16>
    %10 = arith.truncf %8 : vector<16x128xf32> to vector<16x128xbf16>
    %cst_9 = arith.constant dense<0.000000e+00> : vector<32x128xf32>
    %11 = tpu.matmul %9, %10, %cst_9 {dimension_numbers = #tpu.dot_dimension_numbers<[1], [0], [0], [1], [0, 0, 1, 1], [], []>} : vector<32x16xbf16>, vector<16x128xbf16>, vector<32x128xf32> -> vector<32x128xf32>
    %12 = arith.truncf %11 : vector<32x128xf32> to vector<32x128xbf16>
    %c0_10 = arith.constant 0 : index
    %c0_11 = arith.constant 0 : index
    %13 = vector.load %arg5[%c0_10, %c0_11] : memref<128x256xbf16, #tpu.memory_space<vmem>>, vector<128x256xbf16>
    %cst_12 = arith.constant dense<0.000000e+00> : vector<32x256xf32>
    %14 = tpu.matmul %12, %13, %cst_12 {dimension_numbers = #tpu.dot_dimension_numbers<[1], [0], [0], [1], [0, 0, 1, 1], [], []>} : vector<32x128xbf16>, vector<128x256xbf16>, vector<32x256xf32> -> vector<32x256xf32>
    %c0_13 = arith.constant 0 : index
    %c0_14 = arith.constant 0 : index
    %c0_15 = arith.constant 0 : index
    %15 = vector.load %arg6[%c0_13, %c0_14, %c0_15] : memref<1x32x256xf32, #tpu.memory_space<vmem>>, vector<1x32x256xf32>
    %16 = vector.shape_cast %15 : vector<1x32x256xf32> to vector<32x256xf32>
    %17 = vector.shape_cast %14 : vector<32x256xf32> to vector<1x32x256xf32>
    tpu.vector_store %arg6[%c0_13, %c0_14, %c0_15], %17 {strides = array<i32>} : memref<1x32x256xf32, #tpu.memory_space<vmem>>, vector<1x32x256xf32>,
    return
  }
  func.func @transform_0(%arg0: i32) -> (i32, i32, i32) {
    %c0_i32 = arith.constant 0 : i32
    %c0_i32_0 = arith.constant 0 : i32
    %c0_i32_1 = arith.constant 0 : i32
    return %arg0, %c0_i32, %c0_i32_0 : i32, i32, i32
  }
  func.func @transform_1(%arg0: i32) -> (i32, i32) {
    %c0_i32 = arith.constant 0 : i32
    %c0_i32_0 = arith.constant 0 : i32
    %c0_i32_1 = arith.constant 0 : i32
    return %c0_i32, %c0_i32_0 : i32, i32
  }
  func.func @transform_2(%arg0: i32) -> (i32, i32) {
    %c0_i32 = arith.constant 0 : i32
    %c0_i32_0 = arith.constant 0 : i32
    %c0_i32_1 = arith.constant 0 : i32
    return %c0_i32, %c0_i32_0 : i32, i32
  }
  func.func @transform_3(%arg0: i32) -> (i32, i32) {
    %c0_i32 = arith.constant 0 : i32
    %c0_i32_0 = arith.constant 0 : i32
    %c0_i32_1 = arith.constant 0 : i32
    return %c0_i32, %c0_i32_0 : i32, i32
  }
  func.func @transform_4(%arg0: i32) -> (i32, i32) {
    %c0_i32 = arith.constant 0 : i32
    %c0_i32_0 = arith.constant 0 : i32
    %c0_i32_1 = arith.constant 0 : i32
    return %c0_i32, %c0_i32_0 : i32, i32
  }
  func.func @transform_5(%arg0: i32) -> (i32, i32, i32) {
    %c0_i32 = arith.constant 0 : i32
    %c0_i32_0 = arith.constant 0 : i32
    %c0_i32_1 = arith.constant 0 : i32
    return %arg0, %c0_i32, %c0_i32_0 : i32, i32, i32
  }
}

</mosaic_0001>

<llo_original>
// kernel: tpu_custom_call.1
$region0: #{tpu_custom_call.1}
  #allocation0 [shape = 'u32[]', space=smem, size = 0x4, offset = 0x4, fixed_abs, tag = 'smem constant byte address 0x4 - core index']
  #allocation1 [shape = 'u32[144,128]{1,0:T(1,128)}', space=vmem, size = 0x12000, scoped, tag = 'internal scratch']
  %s0 = inlined_call_operand.vmem [shape: bf16[2,16,64], index: 0, kind: input, shape index: {}]
  %s1 = inlined_call_operand.hbm [shape: bf16[64,128], index: 1, kind: input, shape index: {}]
  %s2 = inlined_call_operand.vmem [shape: f32[1,128], index: 2, kind: input, shape index: {}]
  %s3 = inlined_call_operand.vmem [shape: bf16[32,16], index: 3, kind: input, shape index: {}]
  %s4 = inlined_call_operand.hbm [shape: bf16[128,256], index: 4, kind: input, shape index: {}]
  %s5 = inlined_call_operand.hbm [shape: f32[2,32,256], index: 5, kind: output, shape index: {}]
  %s6 = sld [smem:[#allocation0]]
  $region61: #{tpu_custom_call.1} parent=0
    _
  %s8 = ssub.s32 1, %s6
  %s9 = scalar_select 0, %s8, %s6
  $region1: #{tpu_custom_call.1} parent=0
    #allocation2 [shape = 'u8[16384]{0}', space=vmem, size = 0x4000, scoped, tag = 'input window, operand 1, single buffered']
    #allocation3 [shape = 's32[2]{0}', space=sflag, size = 0x8, scoped, tag = 'scoped memory for tpu_custom_call.1']
    #allocation4 [shape = 's32[2]{0}', space=sflag, size = 0x8, scoped, tag = 'scoped memory for tpu_custom_call.1']
    #allocation5 [shape = 'u8[65536]{0}', space=vmem, size = 0x10000, scoped, tag = 'input window, operand 4, single buffered']
    #allocation6 [shape = 's32[1]{0}', space=sflag, size = 0x4, scoped, tag = 'scoped memory for tpu_custom_call.1']
    #allocation7 [shape = 'u8[65536]{0}', space=vmem, size = 0x10000, scoped, tag = 'output window, operand 0']
    %10 = vsyncpa [#allocation3], 0
    %11 = vsyncpa [#allocation6], 0
    %12 = vsyncpa [#allocation4], 0
    %s13 = scalar_lea.sflag [#allocation4], 1
    %14 = vsyncpa %s13, 0
    loop: start=0, step=1, limit=4
    $region2: #{tpu_custom_call.1} parent=1 // loop_pre_header
      _
    $region3: #{tpu_custom_call.1} parent=1 // loop_header
      %s16 = sphi 0, %s20
      %p17 = scmp.ge.s32.totalorder %s16, 4
      %s26 = sphi 0, %s28
      %s29 = sphi 0, %s26
      %s30 = sphi 0, %s29
      %s46 = sphi 0, %s30
      %s50 = sphi 0, %s50
      %s52 = sphi 0, %s50
      %s53 = sphi 0, %s52
      %s67 = sphi 0, %s53
      %s71 = sphi 0, %s71
      %s73 = sphi 0, %s71
      %s74 = sphi 0, %s73
      %s88 = sphi 0, %s74
      %s92 = sphi 0, %s92
      %s94 = sphi 0, %s92
      %s95 = sphi 0, %s94
      %s109 = sphi 0, %s95
      %s113 = sphi 0, %s113
      %s115 = sphi 0, %s113
      %s116 = sphi 0, %s115
      %s130 = sphi 0, %s116
      %s136 = sphi 0, %s138
      %s139 = sphi 0, %s136
      %s140 = sphi 0, %s139
      %s156 = sphi 0, %s140
    $region4: #{tpu_custom_call.1} parent=1 // loop_header_branch
      %19 = sbr.rel (%p17) target = $region8
    $region5: #{tpu_custom_call.1} parent=1 // loop_body
      %s21 = ssub.s32 %s16, 1
      %s22 = ssub.s32 %s16, 2
      %s23 = sadd.s32 %s16, 1
      %s24 = ssub.s32 %s16, %s23
      %p25 = scmp.eq.s32.totalorder %s24, 0
      %s27 = sadd.s32 %s26, 1
      %s28 = scalar_select %p25, %s26, %s27
      %p31 = pneg %p25
      %p32 = scmp.eq.s32.totalorder %s16, 1
      %p33 = por %p31, %p32
      %p34 = scmp.ne.s32.totalorder %s26, %s29
      %p35 = scmp.eq.s32.totalorder %s16, 0
      %p36 = por %p34, %p35
      %p37 = scmp.ne.s32.totalorder %s26, %s29
      %p38 = scmp.eq.s32.totalorder %s21, 1
      %p39 = por %p37, %p38
      %p40 = scmp.ne.s32.totalorder %s29, %s30
      %p41 = scmp.eq.s32.totalorder %s21, 0
      %p42 = por %p40, %p41
      %p43 = scmp.ne.s32.totalorder %s29, %s30
      %p44 = scmp.eq.s32.totalorder %s22, 1
      %p45 = por %p43, %p44
      %p47 = scmp.ne.s32.totalorder %s30, %s46
      %p48 = scmp.eq.s32.totalorder %s22, 0
      %p49 = por %p47, %p48
      %s51 = sadd.s32 %s50, 1
      %p54 = scmp.eq.s32.totalorder %s16, 1
      %p55 = scmp.ne.s32.totalorder %s50, %s52
      %p56 = scmp.eq.s32.totalorder %s16, 0
      %p57 = por %p55, %p56
      %p58 = scmp.ne.s32.totalorder %s50, %s52
      %p59 = scmp.eq.s32.totalorder %s21, 1
      %p60 = por %p58, %p59
      %p61 = scmp.ne.s32.totalorder %s52, %s53
      %p62 = scmp.eq.s32.totalorder %s21, 0
      %p63 = por %p61, %p62
      %p64 = scmp.ne.s32.totalorder %s52, %s53
      %p65 = scmp.eq.s32.totalorder %s22, 1
      %p66 = por %p64, %p65
      %p68 = scmp.ne.s32.totalorder %s53, %s67
      %p69 = scmp.eq.s32.totalorder %s22, 0
      %p70 = por %p68, %p69
      %s72 = sadd.s32 %s71, 1
      %p75 = scmp.eq.s32.totalorder %s16, 1
      %p76 = scmp.ne.s32.totalorder %s71, %s73
      %p77 = scmp.eq.s32.totalorder %s16, 0
      %p78 = por %p76, %p77
      %p79 = scmp.ne.s32.totalorder %s71, %s73
      %p80 = scmp.eq.s32.totalorder %s21, 1
      %p81 = por %p79, %p80
      %p82 = scmp.ne.s32.totalorder %s73, %s74
      %p83 = scmp.eq.s32.totalorder %s21, 0
      %p84 = por %p82, %p83
      %p85 = scmp.ne.s32.totalorder %s73, %s74
      %p86 = scmp.eq.s32.totalorder %s22, 1
      %p87 = por %p85, %p86
      %p89 = scmp.ne.s32.totalorder %s74, %s88
      %p90 = scmp.eq.s32.totalorder %s22, 0
      %p91 = por %p89, %p90
      %s93 = sadd.s32 %s92, 1
      %p96 = scmp.eq.s32.totalorder %s16, 1
      %p97 = scmp.ne.s32.totalorder %s92, %s94
      %p98 = scmp.eq.s32.totalorder %s16, 0
      %p99 = por %p97, %p98
      %p100 = scmp.ne.s32.totalorder %s92, %s94
      %p101 = scmp.eq.s32.totalorder %s21, 1
      %p102 = por %p100, %p101
      %p103 = scmp.ne.s32.totalorder %s94, %s95
      %p104 = scmp.eq.s32.totalorder %s21, 0
      %p105 = por %p103, %p104
      %p106 = scmp.ne.s32.totalorder %s94, %s95
      %p107 = scmp.eq.s32.totalorder %s22, 1
      %p108 = por %p106, %p107
      %p110 = scmp.ne.s32.totalorder %s95, %s109
      %p111 = scmp.eq.s32.totalorder %s22, 0
      %p112 = por %p110, %p111
      %s114 = sadd.s32 %s113, 1
      %p117 = scmp.eq.s32.totalorder %s16, 1
      %p118 = scmp.ne.s32.totalorder %s113, %s115
      %p119 = scmp.eq.s32.totalorder %s16, 0
      %p120 = por %p118, %p119
      %p121 = scmp.ne.s32.totalorder %s113, %s115
      %p122 = scmp.eq.s32.totalorder %s21, 1
      %p123 = por %p121, %p122
      %p124 = scmp.ne.s32.totalorder %s115, %s116
      %p125 = scmp.eq.s32.totalorder %s21, 0
      %p126 = por %p124, %p125
      %p127 = scmp.ne.s32.totalorder %s115, %s116
      %p128 = scmp.eq.s32.totalorder %s22, 1
      %p129 = por %p127, %p128
      %p131 = scmp.ne.s32.totalorder %s116, %s130
      %p132 = scmp.eq.s32.totalorder %s22, 0
      %p133 = por %p131, %p132
      %s134 = ssub.s32 %s16, %s23
      %p135 = scmp.eq.s32.totalorder %s134, 0
      %s137 = sadd.s32 %s136, 1
      %s138 = scalar_select %p135, %s136, %s137
      %p141 = pneg %p135
      %p142 = scmp.eq.s32.totalorder %s16, 1
      %p143 = por %p141, %p142
      %p144 = scmp.ne.s32.totalorder %s136, %s139
      %p145 = scmp.eq.s32.totalorder %s16, 0
      %p146 = por %p144, %p145
      %p147 = scmp.ne.s32.totalorder %s136, %s139
      %p148 = scmp.eq.s32.totalorder %s21, 1
      %p149 = por %p147, %p148
      %p150 = scmp.ne.s32.totalorder %s139, %s140
      %p151 = scmp.eq.s32.totalorder %s21, 0
      %p152 = por %p150, %p151
      %p153 = scmp.ne.s32.totalorder %s139, %s140
      %p154 = scmp.eq.s32.totalorder %s22, 1
      %p155 = por %p153, %p154
      %p157 = scmp.ne.s32.totalorder %s140, %s156
      %p158 = scmp.eq.s32.totalorder %s22, 0
      %p159 = por %p157, %p158
      %p160 = scmp.le.s32.totalorder 1, %s16
      %p161 = scmp.lt.s32.totalorder %s16, 3
      %p162 = pnand %p160, %p161
      %p163 = pneg %p162
      // Predicated region
      $region9: #{tpu_custom_call.1} parent=5 // pred_check
        _
      $region10: #{tpu_custom_call.1} parent=5 // pred_check_branch
        %165 = sbr.rel (%p162) target = $region12
      $region11: #{tpu_custom_call.1} parent=5 // pred_region
        %s166 = ssub.s32 %s16, 1
        // Predicated region
        $region13: #{tpu_custom_call.1} parent=11 // pred_check
          %p167 = pneg %p63
        $region14: #{tpu_custom_call.1} parent=11 // pred_check_branch
          %169 = sbr.rel (%p167) target = $region16
        $region15: #{tpu_custom_call.1} parent=11 // pred_region
          %s171 = ssub.s32 512, 512
          %172 = vsyncadd [#allocation3], %s171
          %s173 = sshll.u32 [#allocation2], 4
          %s174 = int_to_ptr.vmem [resolvable:$true] %s173
          %179 = dma.hbm_to_vmem [thread:$0]  %s1, 512, %s174, [#allocation3], 64, 64, 4
        $region16: #{tpu_custom_call.1} parent=11 // pred_fallthru
          _
        // Predicated region
        $region17: #{tpu_custom_call.1} parent=11 // pred_check
          %p180 = pneg %p84
        $region18: #{tpu_custom_call.1} parent=11 // pred_check_branch
          %182 = sbr.rel (%p180) target = $region20
        $region19: #{tpu_custom_call.1} parent=11 // pred_region
          _
        $region20: #{tpu_custom_call.1} parent=11 // pred_fallthru
          _
        // Predicated region
        $region21: #{tpu_custom_call.1} parent=11 // pred_check
          %p183 = pneg %p105
        $region22: #{tpu_custom_call.1} parent=11 // pred_check_branch
          %185 = sbr.rel (%p183) target = $region24
        $region23: #{tpu_custom_call.1} parent=11 // pred_region
          _
        $region24: #{tpu_custom_call.1} parent=11 // pred_fallthru
          _
        // Predicated region
        $region25: #{tpu_custom_call.1} parent=11 // pred_check
          %p186 = pneg %p126
        $region26: #{tpu_custom_call.1} parent=11 // pred_check_branch
          %188 = sbr.rel (%p186) target = $region28
        $region27: #{tpu_custom_call.1} parent=11 // pred_region
          %s190 = ssub.s32 2048, 2048
          %191 = vsyncadd [#allocation6], %s190
          %s192 = sshll.u32 [#allocation5], 4
          %s193 = int_to_ptr.vmem [resolvable:$true] %s192
          %198 = dma.hbm_to_vmem [thread:$0]  %s4, 2048, %s193, [#allocation6], 128, 128, 8
        $region28: #{tpu_custom_call.1} parent=11 // pred_fallthru
          _
      $region12: #{tpu_custom_call.1} parent=5 // pred_fallthru
        _
      %p199 = scmp.lt.s32.totalorder %s16, 2
      // Predicated region
      $region29: #{tpu_custom_call.1} parent=5 // pred_check
        %p200 = pneg %p199
      $region30: #{tpu_custom_call.1} parent=5 // pred_check_branch
        %202 = sbr.rel (%p200) target = $region32
      $region31: #{tpu_custom_call.1} parent=5 // pred_region
        // Predicated region
        $region33: #{tpu_custom_call.1} parent=31 // pred_check
          %p203 = pneg %p36
        $region34: #{tpu_custom_call.1} parent=31 // pred_check_branch
          %205 = sbr.rel (%p203) target = $region36
        $region35: #{tpu_custom_call.1} parent=31 // pred_region
          %p206 = scmp.lt.s32.totalorder %s16, 1
          %s207 = scalar_select %p206, %s16, 1
          %s208 = smul.addr %s207, 2
          %s209 = smul.addr %s208, 4
          %s210 = scalar_lea.vmem %s0, %s209
        $region36: #{tpu_custom_call.1} parent=31 // pred_fallthru
          _
      $region32: #{tpu_custom_call.1} parent=5 // pred_fallthru
        _
      %p211 = scmp.le.s32.totalorder 1, %s16
      %p212 = scmp.lt.s32.totalorder %s16, 3
      %p213 = pnand %p211, %p212
      %p214 = pneg %p213
      // Predicated region
      $region37: #{tpu_custom_call.1} parent=5 // pred_check
        _
      $region38: #{tpu_custom_call.1} parent=5 // pred_check_branch
        %216 = sbr.rel (%p213) target = $region40
      $region39: #{tpu_custom_call.1} parent=5 // pred_region
        %s217 = ssub.s32 %s16, 1
        // Predicated region
        $region41: #{tpu_custom_call.1} parent=39 // pred_check
          %p218 = pneg %p63
        $region42: #{tpu_custom_call.1} parent=39 // pred_check_branch
          %220 = sbr.rel (%p218) target = $region44
        $region43: #{tpu_custom_call.1} parent=39 // pred_region
          %221 = dma.done [#allocation3], 512
        $region44: #{tpu_custom_call.1} parent=39 // pred_fallthru
          _
        // Predicated region
        $region45: #{tpu_custom_call.1} parent=39 // pred_check
          %p222 = pneg %p126
        $region46: #{tpu_custom_call.1} parent=39 // pred_check_branch
          %224 = sbr.rel (%p222) target = $region48
        $region47: #{tpu_custom_call.1} parent=39 // pred_region
          %225 = dma.done [#allocation6], 2048
        $region48: #{tpu_custom_call.1} parent=39 // pred_fallthru
          _
        %p226 = scmp.lt.s32.totalorder %s21, 1
        %s227 = scalar_select %p226, %s21, 1
        %s228 = smul.addr %s227, 2
        %s229 = smul.addr %s228, 4
        %s230 = scalar_lea.vmem %s0, %s229
        %p231 = pneg %p42
        %p232 = pneg %p39
        %p233 = pneg %p63
        %p234 = pneg %p60
        %p235 = pneg %p84
        %p236 = pneg %p81
        %p237 = pneg %p105
        %p238 = pneg %p102
        %p239 = pneg %p126
        %p240 = pneg %p123
        %p241 = pneg %p152
        %p242 = pneg %p149
        %s243 = sand.u32 %s139, 1
        %s244 = scalar_lea.sflag [#allocation4], %s243
        %s245 = sand.u32 %s139, 1
        %s246 = smul.addr %s245, 64
        %s247 = scalar_lea.vmem [#allocation7], %s246
        %p248 = scmp.lt.s32.totalorder %s21, 1
        %s249 = scalar_select %p248, %s21, 1
        %s250 = smul.addr %s249, 2
        %s251 = smul.addr %s250, 4
        %s252 = scalar_lea.vmem %s0, %s251
        %v254 = vld [vmem:[%s252] sm:$0xf]
        %v255 = vld [vmem:[%s252 + $0x4] sm:$0xf]
        %v256 = vld [vmem:[#allocation2] sm:$0xf]
        %v257 = vld [vmem:[#allocation2 + $0x4] sm:$0xf]
        %v258 = vld [vmem:[#allocation2 + $0x8] sm:$0xf]
        %v259 = vld [vmem:[#allocation2 + $0xc] sm:$0xf]
        %v260 = vld [vmem:[#allocation2 + $0x10] sm:$0xf]
        %v261 = vld [vmem:[#allocation2 + $0x14] sm:$0xf]
        %v262 = vld [vmem:[#allocation2 + $0x18] sm:$0xf]
        %v263 = vld [vmem:[#allocation2 + $0x1c] sm:$0xf]
        %v264 = vld [vmem:[%s2] sm:$0x1]
        %v266 = vlaneseq
        %v267 = vshrl.u32 %v266, 7
        %v268 = vsub.s32 0, %v267
        %v269 = vrot.slane %v264, %v268
        %v273 = vunpack.c.l.b16 %v254
        %v274 = vunpack.c.l.b16 %v255
        %v275 = vpack.c.b16 %v274, %v273
        %v284 = vunpack.c.l.b16 %v256
        %v285 = vunpack.c.l.b16 %v257
        %v286 = vunpack.c.l.b16 %v258
        %v287 = vunpack.c.l.b16 %v259
        %v288 = vunpack.c.l.b16 %v260
        %v289 = vunpack.c.l.b16 %v261
        %v290 = vunpack.c.l.b16 %v262
        %v291 = vunpack.c.l.b16 %v263
        %v292 = vpack.c.b16 %v285, %v284
        %v293 = vpack.c.b16 %v287, %v286
        %v294 = vpack.c.b16 %v289, %v288
        %v295 = vpack.c.b16 %v291, %v290
        %vm300 = vcmask 523264
        %v302 = vsel %vm300, %v275, 0
        %304 = vmatprep.subr.bf16.mxu0 0
        %305 = vmatpush1.bf16.msra.mxu0 %v292
        %306 = vmatprep.subr.bf16.mxu0 0
        %307 = vmatpush1.bf16.msra.mxu0 %v293
        %308 = vmatprep.subr.bf16.mxu0 0
        %309 = vmatpush1.bf16.msra.mxu0 %v294
        %310 = vmatprep.subr.bf16.mxu0 0
        %311 = vmatpush1.bf16.msra.mxu0 %v295
        %312 = vmatprep.subr.bf16.mxu0 0
        %313 = vmatpush1.bf16.msra.mxu0 0
        %314 = vmatprep.subr.bf16.mxu0 0
        %315 = vmatpush1.bf16.msra.mxu0 0
        %316 = vmatprep.subr.bf16.mxu0 0
        %317 = vmatpush1.bf16.msra.mxu0 0
        %318 = vmatprep.subr.bf16.mxu0 0
        %319 = vmatpush1.bf16.msra.mxu0 0
        %320 = vmatprep.subr.bf16.mxu0 0
        %321 = vmatpush1.bf16.msra.mxu0 0
        %322 = vmatprep.subr.bf16.mxu0 0
        %323 = vmatpush1.bf16.msra.mxu0 0
        %324 = vmatprep.subr.bf16.mxu0 0
        %325 = vmatpush1.bf16.msra.mxu0 0
        %326 = vmatprep.subr.bf16.mxu0 0
        %327 = vmatpush1.bf16.msra.mxu0 0
        %328 = vmatprep.subr.bf16.mxu0 0
        %329 = vmatpush1.bf16.msra.mxu0 0
        %330 = vmatprep.subr.bf16.mxu0 0
        %331 = vmatpush1.bf16.msra.mxu0 0
        %332 = vmatprep.subr.bf16.mxu0 0
        %333 = vmatpush1.bf16.msra.mxu0 0
        %334 = vmatprep.subr.bf16.mxu0 0
        %335 = vmatpush1.bf16.msra.mxu0 0
        %336 = vmatprep.mubr.bf16.mxu0 0
        %337 = vmatmul.mubr.bf16.gmra.mrb[0].mxu0 %v302
        %v338 = vpop.f32.mrb[0].mxu0
        %v339 = vadd.f32 %v269, %v338
        %v340 = vpop.f32.mrb[0].mxu0
        %v341 = vpop.f32.mrb[0].mxu0
        %v342 = vadd.f32 %v269, %v341
        %v343 = vpop.f32.mrb[0].mxu0
        %344 = vdwg.mxu0
        %v345 = vmax.f32 %v339, 0.0
        %v346 = vmax.f32 %v342, 0.0
        %v347 = vld [vmem:[%s3] sm:$0xf]
        %v348 = vld [vmem:[%s3 + $0x4] sm:$0xf]
        %v349 = vld [vmem:[%s3 + $0x8] sm:$0xf]
        %v350 = vld [vmem:[%s3 + $0xc] sm:$0xf]
        %v351 = vpack.c.bf16 %v346, %v345
        %v356 = vunpack.c.l.b16 %v347
        %v357 = vunpack.c.l.b16 %v348
        %v358 = vunpack.c.l.b16 %v349
        %v359 = vunpack.c.l.b16 %v350
        %v360 = vpack.c.b16 %v357, %v356
        %v361 = vpack.c.b16 %v359, %v358
        %vm362 = vcmask 130048
        %v364 = vsel %vm362, %v360, 0
        %v367 = vsel %vm362, %v361, 0
        %369 = vmatprep.subr.bf16.mxu0 0
        %370 = vmatpush1.bf16.msra.mxu0 %v351
        %371 = vmatprep.subr.bf16.mxu0 0
        %372 = vmatpush1.bf16.msra.mxu0 0
        %373 = vmatprep.subr.bf16.mxu0 0
        %374 = vmatpush1.bf16.msra.mxu0 0
        %375 = vmatprep.subr.bf16.mxu0 0
        %376 = vmatpush1.bf16.msra.mxu0 0
        %377 = vmatprep.subr.bf16.mxu0 0
        %378 = vmatpush1.bf16.msra.mxu0 0
        %379 = vmatprep.subr.bf16.mxu0 0
        %380 = vmatpush1.bf16.msra.mxu0 0
        %381 = vmatprep.subr.bf16.mxu0 0
        %382 = vmatpush1.bf16.msra.mxu0 0
        %383 = vmatprep.subr.bf16.mxu0 0
        %384 = vmatpush1.bf16.msra.mxu0 0
        %385 = vmatprep.subr.bf16.mxu0 0
        %386 = vmatpush1.bf16.msra.mxu0 0
        %387 = vmatprep.subr.bf16.mxu0 0
        %388 = vmatpush1.bf16.msra.mxu0 0
        %389 = vmatprep.subr.bf16.mxu0 0
        %390 = vmatpush1.bf16.msra.mxu0 0
        %391 = vmatprep.subr.bf16.mxu0 0
        %392 = vmatpush1.bf16.msra.mxu0 0
        %393 = vmatprep.subr.bf16.mxu0 0
        %394 = vmatpush1.bf16.msra.mxu0 0
        %395 = vmatprep.subr.bf16.mxu0 0
        %396 = vmatpush1.bf16.msra.mxu0 0
        %397 = vmatprep.subr.bf16.mxu0 0
        %398 = vmatpush1.bf16.msra.mxu0 0
        %399 = vmatprep.subr.bf16.mxu0 0
        %400 = vmatpush1.bf16.msra.mxu0 0
        %401 = vmatprep.mubr.bf16.mxu0 0
        %402 = vmatmul.mubr.bf16.gmra.mrb[0].mxu0 %v364
        %v403 = vpop.f32.mrb[0].mxu0
        %v404 = vadd.f32 0.0, %v403
        %v405 = vpop.f32.mrb[0].mxu0
        %v406 = vpop.f32.mrb[0].mxu0
        %v407 = vadd.f32 0.0, %v406
        %v408 = vpop.f32.mrb[0].mxu0
        %409 = vmatprep.mubr.bf16.mxu0 0
        %410 = vmatmul.mubr.bf16.gmra.mrb[0].mxu0 %v367
        %v411 = vpop.f32.mrb[0].mxu0
        %v412 = vadd.f32 0.0, %v411
        %v413 = vpop.f32.mrb[0].mxu0
        %v414 = vpop.f32.mrb[0].mxu0
        %v415 = vadd.f32 0.0, %v414
        %v416 = vpop.f32.mrb[0].mxu0
        %417 = vdwg.mxu0
        %v418 = vpack.c.bf16 %v407, %v404
        %v419 = vpack.c.bf16 %v415, %v412
        %v420 = vld [vmem:[#allocation5] sm:$0xff]
        %v421 = vld [vmem:[#allocation5 + $0x8] sm:$0xff]
        %v422 = vld [vmem:[#allocation5 + $0x10] sm:$0xff]
        %v423 = vld [vmem:[#allocation5 + $0x18] sm:$0xff]
        %v424 = vld [vmem:[#allocation5 + $0x20] sm:$0xff]
        %v425 = vld [vmem:[#allocation5 + $0x28] sm:$0xff]
        %v426 = vld [vmem:[#allocation5 + $0x30] sm:$0xff]
        %v427 = vld [vmem:[#allocation5 + $0x38] sm:$0xff]
        %v428 = vld [vmem:[#allocation5 + $0x40] sm:$0xff]
        %v429 = vld [vmem:[#allocation5 + $0x48] sm:$0xff]
        %v430 = vld [vmem:[#allocation5 + $0x50] sm:$0xff]
        %v431 = vld [vmem:[#allocation5 + $0x58] sm:$0xff]
        %v432 = vld [vmem:[#allocation5 + $0x60] sm:$0xff]
        %v433 = vld [vmem:[#allocation5 + $0x68] sm:$0xff]
        %v434 = vld [vmem:[#allocation5 + $0x70] sm:$0xff]
        %v435 = vld [vmem:[#allocation5 + $0x78] sm:$0xff]
        %v452 = vunpack.c.l.b16 %v420
        %v453 = vunpack.c.h.b16 %v420
        %v454 = vunpack.c.l.b16 %v421
        %v455 = vunpack.c.h.b16 %v421
        %v456 = vunpack.c.l.b16 %v422
        %v457 = vunpack.c.h.b16 %v422
        %v458 = vunpack.c.l.b16 %v423
        %v459 = vunpack.c.h.b16 %v423
        %v460 = vunpack.c.l.b16 %v424
        %v461 = vunpack.c.h.b16 %v424
        %v462 = vunpack.c.l.b16 %v425
        %v463 = vunpack.c.h.b16 %v425
        %v464 = vunpack.c.l.b16 %v426
        %v465 = vunpack.c.h.b16 %v426
        %v466 = vunpack.c.l.b16 %v427
        %v467 = vunpack.c.h.b16 %v427
        %v468 = vunpack.c.l.b16 %v428
        %v469 = vunpack.c.h.b16 %v428
        %v470 = vunpack.c.l.b16 %v429
        %v471 = vunpack.c.h.b16 %v429
        %v472 = vunpack.c.l.b16 %v430
        %v473 = vunpack.c.h.b16 %v430
        %v474 = vunpack.c.l.b16 %v431
        %v475 = vunpack.c.h.b16 %v431
        %v476 = vunpack.c.l.b16 %v432
        %v477 = vunpack.c.h.b16 %v432
        %v478 = vunpack.c.l.b16 %v433
        %v479 = vunpack.c.h.b16 %v433
        %v480 = vunpack.c.l.b16 %v434
        %v481 = vunpack.c.h.b16 %v434
        %v482 = vunpack.c.l.b16 %v435
        %v483 = vunpack.c.h.b16 %v435
        %v484 = vpack.c.b16 %v454, %v452
        %v485 = vpack.c.b16 %v455, %v453
        %v486 = vpack.c.b16 %v458, %v456
        %v487 = vpack.c.b16 %v459, %v457
        %v488 = vpack.c.b16 %v462, %v460
        %v489 = vpack.c.b16 %v463, %v461
        %v490 = vpack.c.b16 %v466, %v464
        %v491 = vpack.c.b16 %v467, %v465
        %v492 = vpack.c.b16 %v470, %v468
        %v493 = vpack.c.b16 %v471, %v469
        %v494 = vpack.c.b16 %v474, %v472
        %v495 = vpack.c.b16 %v475, %v473
        %v496 = vpack.c.b16 %v478, %v476
        %v497 = vpack.c.b16 %v479, %v477
        %v498 = vpack.c.b16 %v482, %v480
        %v499 = vpack.c.b16 %v483, %v481
        %516 = vmatprep.subr.bf16.mxu0 %v485
        %517 = vmatpush1.bf16.msra.mxu0 %v484
        %518 = vmatprep.subr.bf16.mxu0 %v487
        %519 = vmatpush1.bf16.msra.mxu0 %v486
        %520 = vmatprep.subr.bf16.mxu0 %v489
        %521 = vmatpush1.bf16.msra.mxu0 %v488
        %522 = vmatprep.subr.bf16.mxu0 %v491
        %523 = vmatpush1.bf16.msra.mxu0 %v490
        %524 = vmatprep.subr.bf16.mxu0 %v493
        %525 = vmatpush1.bf16.msra.mxu0 %v492
        %526 = vmatprep.subr.bf16.mxu0 %v495
        %527 = vmatpush1.bf16.msra.mxu0 %v494
        %528 = vmatprep.subr.bf16.mxu0 %v497
        %529 = vmatpush1.bf16.msra.mxu0 %v496
        %530 = vmatprep.subr.bf16.mxu0 %v499
        %531 = vmatpush1.bf16.msra.mxu0 %v498
        %532 = vmatprep.subr.bf16.mxu0 0
        %533 = vmatpush1.bf16.msra.mxu0 0
        %534 = vmatprep.subr.bf16.mxu0 0
        %535 = vmatpush1.bf16.msra.mxu0 0
        %536 = vmatprep.subr.bf16.mxu0 0
        %537 = vmatpush1.bf16.msra.mxu0 0
        %538 = vmatprep.subr.bf16.mxu0 0
        %539 = vmatpush1.bf16.msra.mxu0 0
        %540 = vmatprep.subr.bf16.mxu0 0
        %541 = vmatpush1.bf16.msra.mxu0 0
        %542 = vmatprep.subr.bf16.mxu0 0
        %543 = vmatpush1.bf16.msra.mxu0 0
        %544 = vmatprep.subr.bf16.mxu0 0
        %545 = vmatpush1.bf16.msra.mxu0 0
        %546 = vmatprep.subr.bf16.mxu0 0
        %547 = vmatpush1.bf16.msra.mxu0 0
        %548 = vmatprep.mubr.bf16.mxu0 0
        %549 = vmatmul.mubr.bf16.gmra.mrb[0].mxu0 %v418
        %v550 = vpop.f32.mrb[0].mxu0
        %v551 = vadd.f32 0.0, %v550
        %v552 = vpop.f32.mrb[0].mxu0
        %v553 = vadd.f32 0.0, %v552
        %v554 = vpop.f32.mrb[0].mxu0
        %v555 = vadd.f32 0.0, %v554
        %v556 = vpop.f32.mrb[0].mxu0
        %v557 = vadd.f32 0.0, %v556
        %558 = vmatprep.mubr.bf16.mxu0 0
        %559 = vmatmul.mubr.bf16.gmra.mrb[0].mxu0 %v419
        %v560 = vpop.f32.mrb[0].mxu0
        %v561 = vadd.f32 0.0, %v560
        %v562 = vpop.f32.mrb[0].mxu0
        %v563 = vadd.f32 0.0, %v562
        %v564 = vpop.f32.mrb[0].mxu0
        %v565 = vadd.f32 0.0, %v564
        %v566 = vpop.f32.mrb[0].mxu0
        %v567 = vadd.f32 0.0, %v566
        %568 = vdwg.mxu0
        %569 = vst [vmem:[%s247] sm:$0xff] %v551
        %570 = vst [vmem:[%s247 + $0x8] sm:$0xff] %v553
        %571 = vst [vmem:[%s247 + $0x10] sm:$0xff] %v555
        %572 = vst [vmem:[%s247 + $0x18] sm:$0xff] %v557
        %573 = vst [vmem:[%s247 + $0x20] sm:$0xff] %v561
        %574 = vst [vmem:[%s247 + $0x28] sm:$0xff] %v563
        %575 = vst [vmem:[%s247 + $0x30] sm:$0xff] %v565
        %576 = vst [vmem:[%s247 + $0x38] sm:$0xff] %v567
        %s577 = sand.u32 %s139, 1
        %s578 = scalar_lea.sflag [#allocation4], %s577
        %s579 = sand.u32 %s139, 1
        %s580 = smul.addr %s579, 64
        %s581 = scalar_lea.vmem [#allocation7], %s580
        // Predicated region
        $region49: #{tpu_custom_call.1} parent=39 // pred_check
          %p582 = pneg %p149
        $region50: #{tpu_custom_call.1} parent=39 // pred_check_branch
          %584 = sbr.rel (%p582) target = $region52
        $region51: #{tpu_custom_call.1} parent=39 // pred_region
          %s586 = ssub.s32 1024, 1024
          %587 = vsyncadd %s578, %s586
          %s588 = smul.addr %s21, 8
          %s589 = smul.addr %s588, 128
          %s590 = scalar_lea.hbm %s5, %s589
          %s591 = sshll.u32 %s581, 4
          %s592 = int_to_ptr.vmem [resolvable:$true] %s591
          %597 = dma.vmem_to_hbm [thread:$0]  %s592, 1024, %s590, %s578, 256, 256, 16
        $region52: #{tpu_custom_call.1} parent=39 // pred_fallthru
          _
      $region40: #{tpu_custom_call.1} parent=5 // pred_fallthru
        _
      %p598 = scmp.le.s32.totalorder 2, %s16
      // Predicated region
      $region53: #{tpu_custom_call.1} parent=5 // pred_check
        %p599 = pneg %p598
      $region54: #{tpu_custom_call.1} parent=5 // pred_check_branch
        %601 = sbr.rel (%p599) target = $region56
      $region55: #{tpu_custom_call.1} parent=5 // pred_region
        %s602 = ssub.s32 %s16, 2
        // Predicated region
        $region57: #{tpu_custom_call.1} parent=55 // pred_check
          %p603 = pneg %p155
        $region58: #{tpu_custom_call.1} parent=55 // pred_check_branch
          %605 = sbr.rel (%p603) target = $region60
        $region59: #{tpu_custom_call.1} parent=55 // pred_region
          %s606 = sand.u32 %s140, 1
          %s607 = scalar_lea.sflag [#allocation4], %s606
          %s608 = sand.u32 %s140, 1
          %s609 = smul.addr %s608, 64
          %s610 = scalar_lea.vmem [#allocation7], %s609
          %611 = dma.done %s607, 1024
        $region60: #{tpu_custom_call.1} parent=55 // pred_fallthru
          _
      $region56: #{tpu_custom_call.1} parent=5 // pred_fallthru
        _
    $region6: #{tpu_custom_call.1} parent=1 // loop_footer
      %s20 = sadd.s32 1, %s16
    $region7: #{tpu_custom_call.1} parent=1 // loop_footer_branch
      %15 = sbr.rel target = $region3
    $region8: #{tpu_custom_call.1} parent=1 // loop_exit
      _
    %612 = vsyncpa [#allocation3], 1
    %s613 = scalar_lea.sflag [#allocation3], 1
    %614 = vsyncpa %s613, 1
    %615 = vsyncpa [#allocation6], 1
    %616 = vsyncpa [#allocation4], 1
    %s617 = scalar_lea.sflag [#allocation4], 1
    %618 = vsyncpa %s617, 1

</llo_original>
